<compile_context>
chip_gen: v5e
topology: v5e:2x2
jax: 0.10.0
libtpu: 0.0.40
codegen_flags: <defaults>
</compile_context>

<pallas_src>
import functools
import math

import jax
import jax.numpy as jnp
from jax.experimental import pallas as pl
from jax.experimental.pallas import tpu as pltpu

LANE = 128
SUBLANE = 8


def _round_up(x, m):
    return ((x + m - 1) // m) * m


# ---------------------------------------------------------------------------
# Kernels
# ---------------------------------------------------------------------------
def _spk_fwd_kernel(x_ref, weff_ref, out_ref, *, threshold):
    """Zero-history fast path: spike[b, :] = (x[b] . w_eff) > threshold."""
    # tv potential per batch row (single matvec on the MXU, f32 accumulation)
    tv_pot = jax.lax.dot_general(
        x_ref[...], weff_ref[...],
        dimension_numbers=(((1,), (1,)), ((), ())),
        preferred_element_type=jnp.float32,
    )                                                       # [TM, 1]
    # Compare per-row, then broadcast only for the lane-dense store.
    spike_row = (tv_pot > threshold).astype(jnp.float32)    # [TM, 1]
    out_ref[...] = jnp.broadcast_to(spike_row, out_ref.shape)


def _spk_fwd_hist_kernel(x_ref, weff_ref, te_ref, hist_ref, out_ref, *, threshold):
    """General path with a nonzero history matrix."""
    tv_pot = jax.lax.dot_general(
        x_ref[...], weff_ref[...],
        dimension_numbers=(((1,), (1,)), ((), ())),
        preferred_element_type=jnp.float32,
    )                                                       # [TM, 1]
    # Reset potential produced directly in row (lane) orientation, no transpose:
    #   h_row[0, j] = sum_n hist[j, n] * te[n]
    h_row = jax.lax.dot_general(
        te_ref[...], hist_ref[...],
        dimension_numbers=(((1,), (1,)), ((), ())),
        preferred_element_type=jnp.float32,
    )                                                       # [1, N_pad]
    v = tv_pot + h_row                                      # outer (TM, N_pad) sum
    out_ref[...] = (v > threshold).astype(jnp.float32)      # lane-dense store


# ---------------------------------------------------------------------------
# Wrapper
# ---------------------------------------------------------------------------
def spk_linear_forward(x, weight, tv_full, te_full, threshold, history=None,
                       block_b=256):
    """One forward of SpkLinear.  history=None ⇒ first call (zero history)."""
    B, K = x.shape
    N, K2 = weight.shape
    assert K == K2
    # NeuronFunc's trailing .view([B, output_n, 1]) is only shape-consistent
    # when batch == output_n (same constraint as the original torch module).
    assert B == N, "SpkLinear forward is only shape-consistent when batch == output_n"

    xf = x.astype(jnp.float32)
    wf = weight.astype(jnp.float32)
    tv_s = tv_full[:N].astype(jnp.float32)               # template[:, :, :N]
    te_s = te_full[:N].astype(jnp.float32)

    # Fold the tv template into the weight once (outside the kernel):
    #   tv_pot = (x @ W^T) @ tv  ==  x @ (tv @ W)^T
    w_eff = jnp.matmul(tv_s[None, :], wf,
                       precision=jax.lax.Precision.HIGHEST)   # [1, K]

    # Tiling: batch-row tiles (multiple of 8 sublanes), lane-dense output (128).
    tm = min(_round_up(block_b, SUBLANE), _round_up(B, SUBLANE))
    b_pad = _round_up(B, tm)
    n_pad = _round_up(N, LANE)

    if b_pad != B:
        xf = jnp.pad(xf, ((0, b_pad - B), (0, 0)))

    grid = (b_pad // tm,)
    x_spec = pl.BlockSpec((tm, K), lambda i: (i, 0))
    w_spec = pl.BlockSpec((1, K), lambda i: (0, 0))
    out_spec = pl.BlockSpec((tm, n_pad), lambda i: (i, 0))
    out_shape = jax.ShapeDtypeStruct((b_pad, n_pad), jnp.float32)
    cparams = pltpu.CompilerParams(dimension_semantics=("parallel",))

    if history is None:
        spikes = pl.pallas_call(
            functools.partial(_spk_fwd_kernel, threshold=float(threshold)),
            out_shape=out_shape,
            grid=grid,
            in_specs=[x_spec, w_spec],
            out_specs=out_spec,
            compiler_params=cparams,
        )(xf, w_eff)
    else:
        hist = history.astype(jnp.float32)
        assert hist.shape == (B, N)
        # history rows index the output lane dim -> pad rows to n_pad with zeros
        histp = jnp.pad(hist, ((0, n_pad - B), (0, 0)))   # [N_pad, N]
        te_row = te_s[None, :]                            # [1, N]
        spikes = pl.pallas_call(
            functools.partial(_spk_fwd_hist_kernel, threshold=float(threshold)),
            out_shape=out_shape,
            grid=grid,
            in_specs=[x_spec, w_spec,
                      pl.BlockSpec((1, N), lambda i: (0, 0)),
                      pl.BlockSpec((n_pad, N), lambda i: (0, 0))],
            out_specs=out_spec,
            compiler_params=cparams,
        )(xf, w_eff, te_row, histp)

    # current_spike.view([B, output_n, 1])
    return spikes[:B, :N].reshape(B, N, 1)


# ---------------------------------------------------------------------------
# Module parameter construction (matches SpikePropUnit / SpkLinear defaults)
# ---------------------------------------------------------------------------
def make_templates(n_step=1000, dt=0.1, tau_m=10.0, tau_s=6.0):
    """Default SRM templates (istrain_neurparam=0, no user curves)."""
    tt = jnp.arange(1, n_step + 1, dtype=jnp.float32) * dt
    tv = (jnp.exp(-tt / tau_m) - jnp.exp(-tt / tau_s)) / (tau_m - tau_s)
    te = -jnp.exp(-tt / tau_m)
    # dv / de only feed the backward pass; not needed for the forward output.
    return tv, te


def xavier_uniform(key, out_n, in_n):
    bound = math.sqrt(6.0 / (in_n + out_n))
    return jax.random.uniform(key, (out_n, in_n), jnp.float32, -bound, bound)


def _reference_spikes(x, weight, tv_s, te_s, threshold, history=None):
    """Plain-JAX reference of the exact torch NeuronFunc forward semantics."""
    hi = jax.lax.Precision.HIGHEST
    lin = jnp.matmul(x, weight.T, precision=hi)               # [B, N]
    tv_pot = jnp.matmul(lin, tv_s, precision=hi)              # [B]
    if history is None:
        h_pot = jnp.zeros((x.shape[0],), jnp.float32)
    else:
        h_pot = jnp.matmul(history, te_s, precision=hi)       # [B]
    v = tv_pot[:, None] + h_pot[None, :]                      # outer (B, B)
    return v, (v > threshold).astype(jnp.float32)


# ---------------------------------------------------------------------------
if __name__ == "__main__":
    key = jax.random.PRNGKey(0)
    k_x, k_w, k_h, k_x2, k_w2, k_h2 = jax.random.split(key, 6)

    tv_full, te_full = make_templates()
    threshold = 0.02
    # Folding tv into W changes f32 summation order; skip potentials that sit
    # within eps of the threshold (none in practice) instead of exact-equality.
    eps = 1e-5

    # --- case 1: small module, first forward call (zero history) -----------
    input_n = 32
    output_n = 8
    batch = output_n          # original module requires batch == output_n

    x = jax.random.normal(k_x, (batch, input_n), dtype=jnp.float32)
    weight = xavier_uniform(k_w, output_n, input_n)
    tv_s = tv_full[:output_n]
    te_s = te_full[:output_n]

    out = spk_linear_forward(x, weight, tv_full, te_full, threshold)
    out = jax.block_until_ready(out)
    assert out.shape == (batch, output_n, 1)
    assert out.dtype == jnp.float32

    ref_v, ref_spk = _reference_spikes(x, weight, tv_s, te_s, threshold)
    got = out.reshape(batch, output_n)
    safe = jnp.abs(ref_v - threshold) > eps
    assert bool(jnp.all(jnp.where(safe, got == ref_spk, True)))

    # --- case 2: nonzero history (NeuronFunc with real reset term) ---------
    hist = jax.random.normal(k_h, (batch, output_n), dtype=jnp.float32)
    out_h = spk_linear_forward(x, weight, tv_full, te_full, threshold,
                               history=hist)
    out_h = jax.block_until_ready(out_h)
    ref_v2, ref_spk2 = _reference_spikes(x, weight, tv_s, te_s, threshold,
                                         history=hist)
    got_h = out_h.reshape(batch, output_n)
    safe2 = jnp.abs(ref_v2 - threshold) > eps
    assert bool(jnp.all(jnp.where(safe2, got_h == ref_spk2, True)))

    # --- case 3: force grid > 1 (two batch-row tiles) to exercise tiling ---
    output_n3 = 16
    batch3 = output_n3
    x3 = jax.random.normal(k_x2, (batch3, input_n), dtype=jnp.float32)
    w3 = xavier_uniform(k_w2, output_n3, input_n)
    h3 = jax.random.normal(k_h2, (batch3, output_n3), dtype=jnp.float32)
    tv_s3 = tv_full[:output_n3]
    te_s3 = te_full[:output_n3]

    out3 = spk_linear_forward(x3, w3, tv_full, te_full, threshold,
                              history=h3, block_b=8)     # grid = (2,)
    out3 = jax.block_until_ready(out3)
    ref_v3, ref_spk3 = _reference_spikes(x3, w3, tv_s3, te_s3, threshold,
                                         history=h3)
    got3 = out3.reshape(batch3, output_n3)
    safe3 = jnp.abs(ref_v3 - threshold) > eps
    assert bool(jnp.all(jnp.where(safe3, got3 == ref_spk3, True)))

    print("KERNEL_OK")
</pallas_src>

<mosaic_0001>
module attributes {stable_mosaic.version = 11 : i64} {
  func.func @_spk_fwd_kernel(%arg0: i32, %arg1: memref<8x32xf32, #tpu.memory_space<vmem>>, %arg2: memref<1x32xf32, #tpu.memory_space<vmem>>, %arg3: memref<8x128xf32, #tpu.memory_space<vmem>>) attributes {dimension_semantics = [#tpu.dimension_semantics<parallel>], iteration_bounds = array<i64: 1>, scalar_prefetch = 0 : i64, scratch_operands = 0 : i64, tpu.core_type = #tpu.core_type<tc>, window_params = [{transform_indices = @transform_0, window_bounds = array<i64: 8, 32>}, {pipeline_mode = #tpu.pipeline_mode<synchronous>, transform_indices = @transform_1, window_bounds = array<i64: 1, 32>}, {transform_indices = @transform_2, window_bounds = array<i64: 8, 128>}]} {
    %c0 = arith.constant 0 : index
    %c0_0 = arith.constant 0 : index
    %0 = vector.load %arg1[%c0, %c0_0] : memref<8x32xf32, #tpu.memory_space<vmem>>, vector<8x32xf32>
    %c0_1 = arith.constant 0 : index
    %c0_2 = arith.constant 0 : index
    %1 = vector.load %arg2[%c0_1, %c0_2] : memref<1x32xf32, #tpu.memory_space<vmem>>, vector<1x32xf32>
    %cst = arith.constant dense<0.000000e+00> : vector<8x1xf32>
    %2 = tpu.matmul %0, %1, %cst {dimension_numbers = #tpu.dot_dimension_numbers<[1], [1], [0], [0], [0, 0, 1, 0], [], []>} : vector<8x32xf32>, vector<1x32xf32>, vector<8x1xf32> -> vector<8x1xf32>
    %cst_3 = arith.constant 2.000000e-02 : f32
    %3 = vector.broadcast %cst_3 : f32 to vector<8x1xf32>
    %4 = arith.cmpf ogt, %2, %3 : vector<8x1xf32>
    %5 = arith.extui %4 : vector<8x1xi1> to vector<8x1xi32>
    %6 = arith.sitofp %5 : vector<8x1xi32> to vector<8x1xf32>
    %7 = vector.shape_cast %6 : vector<8x1xf32> to vector<8x1xf32>
    %8 = vector.broadcast %7 : vector<8x1xf32> to vector<8x128xf32>
    %c0_4 = arith.constant 0 : index
    %c0_5 = arith.constant 0 : index
    %9 = vector.load %arg3[%c0_4, %c0_5] : memref<8x128xf32, #tpu.memory_space<vmem>>, vector<8x128xf32>
    tpu.vector_store %arg3[%c0_4, %c0_5], %8 {strides = array<i32>} : memref<8x128xf32, #tpu.memory_space<vmem>>, vector<8x128xf32>,
    return
  }
  func.func @transform_0(%arg0: i32) -> (i32, i32) {
    %c0_i32 = arith.constant 0 : i32
    %c0_i32_0 = arith.constant 0 : i32
    return %arg0, %c0_i32 : i32, i32
  }
  func.func @transform_1(%arg0: i32) -> (i32, i32) {
    %c0_i32 = arith.constant 0 : i32
    %c0_i32_0 = arith.constant 0 : i32
    %c0_i32_1 = arith.constant 0 : i32
    return %c0_i32, %c0_i32_0 : i32, i32
  }
  func.func @transform_2(%arg0: i32) -> (i32, i32) {
    %c0_i32 = arith.constant 0 : i32
    %c0_i32_0 = arith.constant 0 : i32
    return %arg0, %c0_i32 : i32, i32
  }
}

</mosaic_0001>

<llo_original>
// kernel: tpu_custom_call.1
$region0: #{tpu_custom_call.1}
  #allocation0 [shape = 'u32[]', space=smem, size = 0x4, offset = 0x4, fixed_abs, tag = 'smem constant byte address 0x4 - core index']
  #allocation1 [shape = 'u32[72,128]{1,0:T(1,128)}', space=vmem, size = 0x9000, scoped, tag = 'internal scratch']
  %s0 = inlined_call_operand.hbm [shape: f32[8,32], index: 0, kind: input, shape index: {}]
  %s1 = inlined_call_operand.hbm [shape: f32[1,32], index: 1, kind: input, shape index: {}]
  %s2 = inlined_call_operand.hbm [shape: f32[8,128], index: 2, kind: output, shape index: {}]
  %s3 = sld [smem:[#allocation0]]
  $region26: #{tpu_custom_call.1} parent=0
    _
  %s5 = ssub.s32 1, %s3
  %s6 = scalar_select 0, %s5, %s3
  $region1: #{tpu_custom_call.1} parent=0
    #allocation2 [shape = 'u8[4096]{0}', space=vmem, size = 0x1000, scoped, tag = 'input window, operand 0, single buffered']
    #allocation3 [shape = 's32[1]{0}', space=sflag, size = 0x4, scoped, tag = 'scoped memory for tpu_custom_call.1']
    #allocation4 [shape = 's32[1]{0}', space=sflag, size = 0x4, scoped, tag = 'scoped memory for tpu_custom_call.1']
    #allocation5 [shape = 'u8[512]{0}', space=vmem, size = 0x400, scoped, tag = 'input window, operand 1, single buffered']
    #allocation6 [shape = 's32[1]{0}', space=sflag, size = 0x4, scoped, tag = 'scoped memory for tpu_custom_call.1']
    #allocation7 [shape = 'u8[4096]{0}', space=vmem, size = 0x1000, scoped, tag = 'output window, operand 0, single buffered']
    %7 = vsyncpa [#allocation3], 0
    %8 = vsyncpa [#allocation6], 0
    %9 = vsyncpa [#allocation4], 0
    // Predicated region
    $region2: #{tpu_custom_call.1} parent=1 // pred_check
      _
    $region3: #{tpu_custom_call.1} parent=1 // pred_check_branch
      %11 = sbr.rel (0) target = $region5
    $region4: #{tpu_custom_call.1} parent=1 // pred_region
      %13 = vsyncadd [#allocation3], 0
      %s15 = sshll.u32 %s0, 4
      %s16 = int_to_ptr.hbm [resolvable:$true] %s15
      %s17 = sshll.u32 [#allocation2], 4
      %s18 = int_to_ptr.vmem [resolvable:$true] %s17
      %20 = dma.hbm_to_vmem [thread:$0]  %s16, 128, %s18, [#allocation3]
    $region5: #{tpu_custom_call.1} parent=1 // pred_fallthru
      _
    // Predicated region
    $region6: #{tpu_custom_call.1} parent=1 // pred_check
      _
    $region7: #{tpu_custom_call.1} parent=1 // pred_check_branch
      %22 = sbr.rel (0) target = $region9
    $region8: #{tpu_custom_call.1} parent=1 // pred_region
      %24 = vsyncadd [#allocation6], 0
      %s26 = sshll.u32 %s1, 4
      %s27 = int_to_ptr.hbm [resolvable:$true] %s26
      %s28 = sshll.u32 [#allocation5], 4
      %s29 = int_to_ptr.vmem [resolvable:$true] %s28
      %31 = dma.hbm_to_vmem [thread:$0]  %s27, 16, %s29, [#allocation6]
    $region9: #{tpu_custom_call.1} parent=1 // pred_fallthru
      _
    // Predicated region
    $region10: #{tpu_custom_call.1} parent=1 // pred_check
      _
    $region11: #{tpu_custom_call.1} parent=1 // pred_check_branch
      %33 = sbr.rel (0) target = $region13
    $region12: #{tpu_custom_call.1} parent=1 // pred_region
      %35 = dma.done [#allocation3], 128
    $region13: #{tpu_custom_call.1} parent=1 // pred_fallthru
      _
    // Predicated region
    $region14: #{tpu_custom_call.1} parent=1 // pred_check
      _
    $region15: #{tpu_custom_call.1} parent=1 // pred_check_branch
      %37 = sbr.rel (0) target = $region17
    $region16: #{tpu_custom_call.1} parent=1 // pred_region
      %39 = dma.done [#allocation6], 16
    $region17: #{tpu_custom_call.1} parent=1 // pred_fallthru
      _
    %v40 = vld [vmem:[#allocation2] sm:$0xff]
    %v41 = vld [vmem:[#allocation5] sm:$0x1]
    %v43 = vperm.slane %v41, 0
    %v45 = vmul.f32 %v40, %v43
    %vm46 = vcmask 261120
    %v47 = vsel %vm46, %v45, 0.0
    %48 = vadd.xlane.f32.xlu0 %v47
    %v49 = vpop.xlane.xlu0 %48
    %vm50 = vcmp.gt.f32.partialorder %v49, 0.02
    %v51 = vsel %vm50, 1, 0
    %v52 = vcvt.s32.f32 %v51
    %53 = vst [vmem:[#allocation7] sm:$0xff] %v52
    // Predicated region
    $region18: #{tpu_custom_call.1} parent=1 // pred_check
      _
    $region19: #{tpu_custom_call.1} parent=1 // pred_check_branch
      %55 = sbr.rel (0) target = $region21
    $region20: #{tpu_custom_call.1} parent=1 // pred_region
      %57 = vsyncadd [#allocation4], 0
      %s59 = sshll.u32 [#allocation7], 4
      %s60 = int_to_ptr.vmem [resolvable:$true] %s59
      %s61 = sshll.u32 %s2, 4
      %s62 = int_to_ptr.hbm [resolvable:$true] %s61
      %64 = dma.vmem_to_hbm [thread:$0]  %s60, 128, %s62, [#allocation4]
    $region21: #{tpu_custom_call.1} parent=1 // pred_fallthru
      _
    // Predicated region
    $region22: #{tpu_custom_call.1} parent=1 // pred_check
      _
    $region23: #{tpu_custom_call.1} parent=1 // pred_check_branch
      %66 = sbr.rel (0) target = $region25
    $region24: #{tpu_custom_call.1} parent=1 // pred_region
      %68 = dma.done [#allocation4], 128
    $region25: #{tpu_custom_call.1} parent=1 // pred_fallthru
      _
    %69 = vsyncpa [#allocation3], 1
    %70 = vsyncpa [#allocation6], 1
    %71 = vsyncpa [#allocation4], 1

</llo_original>
